<compile_context>
chip_gen: v7x
topology: tpu7x:2x2x1
jax: 0.10.0
libtpu: 0.0.40
codegen_flags: <defaults>
</compile_context>

<pallas_src>
import jax
import jax.numpy as jnp
from jax import lax
from jax.experimental import pallas as pl
from jax.experimental.pallas import tpu as pltpu

BOARD_FLAT = 1 * 22 * 10          # 220
EMB_VOCAB, EMB_DIM = 7, 5
H1, H2, OUT = 130, 65, 48


def _round_up(x, m):
    return (x + m - 1) // m * m


# ----------------------------------------------------------------------------
# Kernel
# ----------------------------------------------------------------------------
def cnn2_kernel(board_ref, piece_ref, w1b_ref, tab_ref,
                w2_ref, b2_ref, w3_ref, b3_ref, out_ref):
    # board_ref: (bt, 220) cd      piece_ref: (bt, 1) int32
    # w1b_ref:   (220, 130) cd     tab_ref:   (7, 130) cd = emb @ W1_piece + b1
    # w2_ref:    (130, 65) cd      b2_ref:    (1, 65)  f32
    # w3_ref:    (65, 48)  cd      b3_ref:    (1, 48)  f32
    # out_ref:   (bt, 48)  f32
    board = board_ref[...]
    bt = board.shape[0]

    # Embedding lookup as a one-hot matmul against the folded fc1 table.
    # NOTE: piece values outside [1, 7] (incl. garbage rows of a partial last
    # block) yield an all-zero one-hot, i.e. no embedding contribution; those
    # rows are never stored (masked) or are caller responsibility.
    idx = piece_ref[...] - 1                                   # (bt, 1)
    iota = lax.broadcasted_iota(jnp.int32, (bt, EMB_VOCAB), 1)
    onehot = (iota == idx).astype(tab_ref.dtype)               # (bt, 7)

    h1 = (jnp.dot(board, w1b_ref[...], preferred_element_type=jnp.float32)
          + jnp.dot(onehot, tab_ref[...], preferred_element_type=jnp.float32))
    h1 = jnp.maximum(h1, 0.0)                                  # f32 (bt, 130)

    h2 = (jnp.dot(h1.astype(w2_ref.dtype), w2_ref[...],
                  preferred_element_type=jnp.float32) + b2_ref[...])
    h2 = jnp.maximum(h2, 0.0)                                  # f32 (bt, 65)

    out = (jnp.dot(h2.astype(w3_ref.dtype), w3_ref[...],
                   preferred_element_type=jnp.float32) + b3_ref[...])
    out_ref[...] = out.astype(out_ref.dtype)                   # (bt, 48)


# ----------------------------------------------------------------------------
# Wrapper
# ----------------------------------------------------------------------------
def prepare_params(params, compute_dtype=jnp.float32):
    """One-time parameter prep: split fc1, fold embedding+b1, cast weights.

    Call once and reuse the result across forward calls so the (optional)
    bf16 weight cast is not re-materialized per call.
    """
    emb, w1, b1, w2, b2, w3, b3 = params
    w1_board = w1[:BOARD_FLAT, :].astype(compute_dtype)            # (220, 130)
    table = (emb @ w1[BOARD_FLAT:, :] + b1[None, :]).astype(compute_dtype)  # (7, 130)
    w2c = w2.astype(compute_dtype)                                 # (130, 65)
    w3c = w3.astype(compute_dtype)                                 # (65, 48)
    b2r = b2.reshape(1, -1).astype(jnp.float32)                    # (1, 65)
    b3r = b3.reshape(1, -1).astype(jnp.float32)                    # (1, 48)
    return w1_board, table, w2c, b2r, w3c, b3r


def _choose_block(batch, block_rows, min_grid_steps):
    """Batch tile: multiple of 8 (or == batch), >= min_grid_steps grid steps."""
    if batch <= 8:
        return batch                       # single full-array block, no masking
    target = max(8, _round_up(pl.cdiv(batch, min_grid_steps), 8))
    return min(_round_up(block_rows, 8), target)


def _vmem_estimate_bytes(bt, cd_itemsize):
    """Conservative double-buffered VMEM footprint (incl. lane/sublane pad)."""
    lane = lambda n: _round_up(n, 128)
    sub = lambda n: _round_up(n, 8)
    board = 2 * bt * lane(BOARD_FLAT) * cd_itemsize
    piece = 2 * bt * lane(1) * 4
    out = 2 * bt * lane(OUT) * 4
    weights = 2 * cd_itemsize * (sub(BOARD_FLAT) * lane(H1)
                                 + sub(EMB_VOCAB) * lane(H1)
                                 + sub(H1) * lane(H2)
                                 + sub(H2) * lane(OUT))
    biases = 2 * 4 * (8 * lane(H2) + 8 * lane(OUT))
    return board + piece + out + weights + biases


def cnn2_forward_prepared(board_nchw, piece, prepared, *,
                          block_rows=2048, min_grid_steps=2):
    """board_nchw: (B, 1, 22, 10), piece: (B,) int with values in [1, 7]."""
    w1_board, table, w2c, b2r, w3c, b3r = prepared
    cd = w1_board.dtype
    cd_itemsize = jnp.dtype(cd).itemsize
    B = board_nchw.shape[0]

    board_flat = board_nchw.reshape(B, -1)
    if board_flat.dtype != cd:
        # NOTE: for the bf16 fast path, deliver the board already in bf16 from
        # the producer; this wrapper cast is a separate XLA pass (extra HBM
        # read+write) kept only as a correctness fallback.
        board_flat = board_flat.astype(cd)
    piece_2d = piece.reshape(B, 1).astype(jnp.int32)

    bt = _choose_block(B, block_rows, min_grid_steps)
    grid = (pl.cdiv(B, bt),)

    def row_spec(shape):
        return pl.BlockSpec(shape, lambda i: (i, 0))

    def fix_spec(shape):
        return pl.BlockSpec(shape, lambda i: (0, 0))

    flops = 2 * B * (BOARD_FLAT * H1 + EMB_VOCAB * H1 + H1 * H2 + H2 * OUT)
    bytes_accessed = (B * (BOARD_FLAT * cd_itemsize + 4 + OUT * 4)
                      + cd_itemsize * (BOARD_FLAT * H1 + EMB_VOCAB * H1
                                       + H1 * H2 + H2 * OUT)
                      + 4 * (H2 + OUT))
    cost = pl.CostEstimate(flops=flops, transcendentals=0,
                           bytes_accessed=bytes_accessed)

    cp_kwargs = dict(dimension_semantics=("parallel",))
    vmem_est = _vmem_estimate_bytes(bt, cd_itemsize)
    if vmem_est > (32 << 20):
        # Only needed for very large block_rows; keep headroom, stay under the
        # v7x physical 64 MiB.
        cp_kwargs["vmem_limit_bytes"] = min(vmem_est + (4 << 20), 60 << 20)

    out = pl.pallas_call(
        cnn2_kernel,
        out_shape=jax.ShapeDtypeStruct((B, OUT), jnp.float32),
        grid=grid,
        in_specs=[
            row_spec((bt, BOARD_FLAT)),          # board tile (partial-last-block OK)
            row_spec((bt, 1)),                   # piece tile
            fix_spec((BOARD_FLAT, H1)),          # w1 (board part), resident
            fix_spec((EMB_VOCAB, H1)),           # folded emb/fc1 table (+b1)
            fix_spec((H1, H2)),                  # w2
            fix_spec((1, H2)),                   # b2 (f32)
            fix_spec((H2, OUT)),                 # w3
            fix_spec((1, OUT)),                  # b3 (f32)
        ],
        out_specs=row_spec((bt, OUT)),           # masked vst on partial block
        cost_estimate=cost,
        compiler_params=pltpu.CompilerParams(**cp_kwargs),
    )(board_flat, piece_2d, w1_board, table, w2c, b2r, w3c, b3r)

    return out


def cnn2_forward(board_nchw, piece, params, *,
                 block_rows=2048, min_grid_steps=2,
                 compute_dtype=jnp.float32):
    """Convenience wrapper (prepares params per call; prefer prepare_params)."""
    prepared = prepare_params(params, compute_dtype)
    return cnn2_forward_prepared(board_nchw, piece, prepared,
                                 block_rows=block_rows,
                                 min_grid_steps=min_grid_steps)


# ----------------------------------------------------------------------------
# Reference + test harness
# ----------------------------------------------------------------------------
def init_params(key):
    """Deterministic synthetic parameters matching CNN2's shapes."""
    ks = jax.random.split(key, 7)
    emb = jax.random.normal(ks[0], (EMB_VOCAB, EMB_DIM), jnp.float32)
    # Linear weights stored transposed: (in_features, out_features).
    w1 = jax.random.normal(ks[1], (BOARD_FLAT + EMB_DIM, H1), jnp.float32) * 0.05
    b1 = jax.random.normal(ks[2], (H1,), jnp.float32) * 0.05
    w2 = jax.random.normal(ks[3], (H1, H2), jnp.float32) * 0.05
    b2 = jax.random.normal(ks[4], (H2,), jnp.float32) * 0.05
    w3 = jax.random.normal(ks[5], (H2, OUT), jnp.float32) * 0.05
    b3 = jax.random.normal(ks[6], (OUT,), jnp.float32) * 0.05
    return emb, w1, b1, w2, b2, w3, b3


def reference_forward(board_nchw, piece, params):
    """Pure-JAX reference reproducing the PyTorch forward exactly."""
    emb, w1, b1, w2, b2, w3, b3 = params
    B = board_nchw.shape[0]
    board = board_nchw.reshape(B, -1).astype(jnp.float32)
    mino = emb[piece - 1].reshape(B, -1)
    combined = jnp.concatenate([board, mino], axis=1)
    x = jnp.maximum(combined @ w1 + b1, 0.0)
    x = jnp.maximum(x @ w2 + b2, 0.0)
    return x @ w3 + b3


if __name__ == "__main__":
    key = jax.random.PRNGKey(0)
    k_board, k_piece, k_params, k_board2, k_piece2 = jax.random.split(key, 5)

    params = init_params(k_params)
    prepared_f32 = prepare_params(params, jnp.float32)

    # Small batch (B=2): single full-array block, no padding / masking.
    B = 2
    board = jax.random.normal(k_board, (B, 1, 22, 10), jnp.float32)
    piece = jax.random.randint(k_piece, (B,), 1, 8, dtype=jnp.int32)  # 1..7
    ref = reference_forward(board, piece, params)

    out = jax.block_until_ready(
        cnn2_forward_prepared(board, piece, prepared_f32))
    assert out.shape == (B, OUT)
    assert jnp.allclose(out, ref, atol=1e-4, rtol=1e-4), "f32 mismatch vs reference"

    # Multi-step grid with a partial last block (B=37, bt=16 -> 3 steps,
    # last block has 5 valid rows): verifies Pallas's masked partial-block
    # stores / garbage-read handling end-to-end against the reference.
    B2 = 37
    board2 = jax.random.normal(k_board2, (B2, 1, 22, 10), jnp.float32)
    piece2 = jax.random.randint(k_piece2, (B2,), 1, 8, dtype=jnp.int32)
    ref2 = reference_forward(board2, piece2, params)
    out2 = jax.block_until_ready(
        cnn2_forward_prepared(board2, piece2, prepared_f32,
                              block_rows=16, min_grid_steps=3))
    assert out2.shape == (B2, OUT)
    assert jnp.allclose(out2, ref2, atol=1e-4, rtol=1e-4), "tiled f32 mismatch"

    # bf16 fast path: weights prepared once in bf16, board delivered in bf16 by
    # the producer (no wrapper cast pass); f32 accumulation inside the kernel.
    prepared_bf16 = prepare_params(params, jnp.bfloat16)
    board_bf16 = board.astype(jnp.bfloat16)     # producer-side cast
    out_bf16 = jax.block_until_ready(
        cnn2_forward_prepared(board_bf16, piece, prepared_bf16))
    assert out_bf16.shape == (B, OUT)
    assert jnp.allclose(out_bf16, ref, atol=5e-2, rtol=5e-2), "bf16 mismatch"

    print("KERNEL_OK")
</pallas_src>

<mosaic_0001>
module attributes {stable_mosaic.version = 11 : i64} {
  func.func @cnn2_kernel(%arg0: i32, %arg1: memref<2x220xf32, #tpu.memory_space<vmem>>, %arg2: memref<2x1xi32, #tpu.memory_space<vmem>>, %arg3: memref<220x130xf32, #tpu.memory_space<vmem>>, %arg4: memref<7x130xf32, #tpu.memory_space<vmem>>, %arg5: memref<130x65xf32, #tpu.memory_space<vmem>>, %arg6: memref<1x65xf32, #tpu.memory_space<vmem>>, %arg7: memref<65x48xf32, #tpu.memory_space<vmem>>, %arg8: memref<1x48xf32, #tpu.memory_space<vmem>>, %arg9: memref<2x48xf32, #tpu.memory_space<vmem>>) attributes {dimension_semantics = [#tpu.dimension_semantics<parallel>], iteration_bounds = array<i64: 1>, scalar_prefetch = 0 : i64, scratch_operands = 0 : i64, tpu.core_type = #tpu.core_type<tc>, window_params = [{transform_indices = @transform_0, window_bounds = array<i64: 2, 220>}, {transform_indices = @transform_1, window_bounds = array<i64: 2, 1>}, {pipeline_mode = #tpu.pipeline_mode<synchronous>, transform_indices = @transform_2, window_bounds = array<i64: 220, 130>}, {pipeline_mode = #tpu.pipeline_mode<synchronous>, transform_indices = @transform_3, window_bounds = array<i64: 7, 130>}, {pipeline_mode = #tpu.pipeline_mode<synchronous>, transform_indices = @transform_4, window_bounds = array<i64: 130, 65>}, {pipeline_mode = #tpu.pipeline_mode<synchronous>, transform_indices = @transform_5, window_bounds = array<i64: 1, 65>}, {pipeline_mode = #tpu.pipeline_mode<synchronous>, transform_indices = @transform_6, window_bounds = array<i64: 65, 48>}, {pipeline_mode = #tpu.pipeline_mode<synchronous>, transform_indices = @transform_7, window_bounds = array<i64: 1, 48>}, {transform_indices = @transform_8, window_bounds = array<i64: 2, 48>}]} {
    %c0 = arith.constant 0 : index
    %c0_0 = arith.constant 0 : index
    %0 = vector.load %arg1[%c0, %c0_0] : memref<2x220xf32, #tpu.memory_space<vmem>>, vector<2x220xf32>
    %c0_1 = arith.constant 0 : index
    %c0_2 = arith.constant 0 : index
    %1 = vector.load %arg2[%c0_1, %c0_2] : memref<2x1xi32, #tpu.memory_space<vmem>>, vector<2x1xi32>
    %c1_i32 = arith.constant 1 : i32
    %2 = vector.broadcast %c1_i32 : i32 to vector<2x1xi32>
    %3 = arith.subi %1, %2 : vector<2x1xi32>
    %4 = tpu.iota {dimensions = array<i32: 1>} : vector<2x7xi32>
    %5 = vector.broadcast %3 : vector<2x1xi32> to vector<2x7xi32>
    %6 = arith.cmpi eq, %4, %5 : vector<2x7xi32>
    %7 = arith.extui %6 : vector<2x7xi1> to vector<2x7xi32>
    %8 = arith.sitofp %7 : vector<2x7xi32> to vector<2x7xf32>
    %c0_3 = arith.constant 0 : index
    %c0_4 = arith.constant 0 : index
    %9 = vector.load %arg3[%c0_3, %c0_4] : memref<220x130xf32, #tpu.memory_space<vmem>>, vector<220x130xf32>
    %cst = arith.constant dense<0.000000e+00> : vector<2x130xf32>
    %10 = tpu.matmul %0, %9, %cst {dimension_numbers = #tpu.dot_dimension_numbers<[1], [0], [0], [1], [0, 0, 1, 1], [], []>} : vector<2x220xf32>, vector<220x130xf32>, vector<2x130xf32> -> vector<2x130xf32>
    %c0_5 = arith.constant 0 : index
    %c0_6 = arith.constant 0 : index
    %11 = vector.load %arg4[%c0_5, %c0_6] : memref<7x130xf32, #tpu.memory_space<vmem>>, vector<7x130xf32>
    %cst_7 = arith.constant dense<0.000000e+00> : vector<2x130xf32>
    %12 = tpu.matmul %8, %11, %cst_7 {dimension_numbers = #tpu.dot_dimension_numbers<[1], [0], [0], [1], [0, 0, 1, 1], [], []>} : vector<2x7xf32>, vector<7x130xf32>, vector<2x130xf32> -> vector<2x130xf32>
    %13 = arith.addf %10, %12 : vector<2x130xf32>
    %cst_8 = arith.constant 0.000000e+00 : f32
    %14 = vector.broadcast %cst_8 : f32 to vector<2x130xf32>
    %15 = arith.maximumf %13, %14 : vector<2x130xf32>
    %c0_9 = arith.constant 0 : index
    %c0_10 = arith.constant 0 : index
    %16 = vector.load %arg5[%c0_9, %c0_10] : memref<130x65xf32, #tpu.memory_space<vmem>>, vector<130x65xf32>
    %cst_11 = arith.constant dense<0.000000e+00> : vector<2x65xf32>
    %17 = tpu.matmul %15, %16, %cst_11 {dimension_numbers = #tpu.dot_dimension_numbers<[1], [0], [0], [1], [0, 0, 1, 1], [], []>} : vector<2x130xf32>, vector<130x65xf32>, vector<2x65xf32> -> vector<2x65xf32>
    %c0_12 = arith.constant 0 : index
    %c0_13 = arith.constant 0 : index
    %18 = vector.load %arg6[%c0_12, %c0_13] : memref<1x65xf32, #tpu.memory_space<vmem>>, vector<1x65xf32>
    %19 = vector.broadcast %18 : vector<1x65xf32> to vector<2x65xf32>
    %20 = arith.addf %17, %19 : vector<2x65xf32>
    %cst_14 = arith.constant 0.000000e+00 : f32
    %21 = vector.broadcast %cst_14 : f32 to vector<2x65xf32>
    %22 = arith.maximumf %20, %21 : vector<2x65xf32>
    %c0_15 = arith.constant 0 : index
    %c0_16 = arith.constant 0 : index
    %23 = vector.load %arg7[%c0_15, %c0_16] : memref<65x48xf32, #tpu.memory_space<vmem>>, vector<65x48xf32>
    %cst_17 = arith.constant dense<0.000000e+00> : vector<2x48xf32>
    %24 = tpu.matmul %22, %23, %cst_17 {dimension_numbers = #tpu.dot_dimension_numbers<[1], [0], [0], [1], [0, 0, 1, 1], [], []>} : vector<2x65xf32>, vector<65x48xf32>, vector<2x48xf32> -> vector<2x48xf32>
    %c0_18 = arith.constant 0 : index
    %c0_19 = arith.constant 0 : index
    %25 = vector.load %arg8[%c0_18, %c0_19] : memref<1x48xf32, #tpu.memory_space<vmem>>, vector<1x48xf32>
    %26 = vector.broadcast %25 : vector<1x48xf32> to vector<2x48xf32>
    %27 = arith.addf %24, %26 : vector<2x48xf32>
    %c0_20 = arith.constant 0 : index
    %c0_21 = arith.constant 0 : index
    %28 = vector.load %arg9[%c0_20, %c0_21] : memref<2x48xf32, #tpu.memory_space<vmem>>, vector<2x48xf32>
    tpu.vector_store %arg9[%c0_20, %c0_21], %27 {strides = array<i32>} : memref<2x48xf32, #tpu.memory_space<vmem>>, vector<2x48xf32>,
    return
  }
  func.func @transform_0(%arg0: i32) -> (i32, i32) {
    %c0_i32 = arith.constant 0 : i32
    %c0_i32_0 = arith.constant 0 : i32
    return %arg0, %c0_i32 : i32, i32
  }
  func.func @transform_1(%arg0: i32) -> (i32, i32) {
    %c0_i32 = arith.constant 0 : i32
    %c0_i32_0 = arith.constant 0 : i32
    return %arg0, %c0_i32 : i32, i32
  }
  func.func @transform_2(%arg0: i32) -> (i32, i32) {
    %c0_i32 = arith.constant 0 : i32
    %c0_i32_0 = arith.constant 0 : i32
    %c0_i32_1 = arith.constant 0 : i32
    return %c0_i32, %c0_i32_0 : i32, i32
  }
  func.func @transform_3(%arg0: i32) -> (i32, i32) {
    %c0_i32 = arith.constant 0 : i32
    %c0_i32_0 = arith.constant 0 : i32
    %c0_i32_1 = arith.constant 0 : i32
    return %c0_i32, %c0_i32_0 : i32, i32
  }
  func.func @transform_4(%arg0: i32) -> (i32, i32) {
    %c0_i32 = arith.constant 0 : i32
    %c0_i32_0 = arith.constant 0 : i32
    %c0_i32_1 = arith.constant 0 : i32
    return %c0_i32, %c0_i32_0 : i32, i32
  }
  func.func @transform_5(%arg0: i32) -> (i32, i32) {
    %c0_i32 = arith.constant 0 : i32
    %c0_i32_0 = arith.constant 0 : i32
    %c0_i32_1 = arith.constant 0 : i32
    return %c0_i32, %c0_i32_0 : i32, i32
  }
  func.func @transform_6(%arg0: i32) -> (i32, i32) {
    %c0_i32 = arith.constant 0 : i32
    %c0_i32_0 = arith.constant 0 : i32
    %c0_i32_1 = arith.constant 0 : i32
    return %c0_i32, %c0_i32_0 : i32, i32
  }
  func.func @transform_7(%arg0: i32) -> (i32, i32) {
    %c0_i32 = arith.constant 0 : i32
    %c0_i32_0 = arith.constant 0 : i32
    %c0_i32_1 = arith.constant 0 : i32
    return %c0_i32, %c0_i32_0 : i32, i32
  }
  func.func @transform_8(%arg0: i32) -> (i32, i32) {
    %c0_i32 = arith.constant 0 : i32
    %c0_i32_0 = arith.constant 0 : i32
    return %arg0, %c0_i32 : i32, i32
  }
}

</mosaic_0001>

<llo_original>
// kernel: tpu_custom_call.1
$region0: #{tpu_custom_call.1}
  #allocation0 [shape = 'u32[]', space=smem, size = 0x4, offset = 0x4, fixed_abs, tag = 'smem constant byte address 0x4 - core index']
  #allocation1 [shape = 'u32[144,128]{1,0:T(1,128)}', space=vmem, size = 0x12000, scoped, tag = 'internal scratch']
  %s0 = inlined_call_operand.vmem [shape: f32[2,220], index: 0, kind: input, shape index: {}]
  %s1 = inlined_call_operand.vmem [shape: s32[2,1], index: 1, kind: input, shape index: {}]
  %s2 = inlined_call_operand.vmem [shape: f32[220,130], index: 2, kind: input, shape index: {}]
  %s3 = inlined_call_operand.vmem [shape: f32[7,130], index: 3, kind: input, shape index: {}]
  %s4 = inlined_call_operand.vmem [shape: f32[130,65], index: 4, kind: input, shape index: {}]
  %s5 = inlined_call_operand.vmem [shape: f32[1,65], index: 5, kind: input, shape index: {}]
  %s6 = inlined_call_operand.vmem [shape: f32[65,48], index: 6, kind: input, shape index: {}]
  %s7 = inlined_call_operand.vmem [shape: f32[1,48], index: 7, kind: input, shape index: {}]
  %s8 = inlined_call_operand.hbm [shape: f32[2,48], index: 8, kind: output, shape index: {}]
  %s9 = sld [smem:[#allocation0]]
  $region42: #{tpu_custom_call.1} parent=0
    _
  %s11 = ssub.s32 1, %s9
  %s12 = scalar_select 0, %s11, %s9
  $region1: #{tpu_custom_call.1} parent=0
    #allocation2 [shape = 'u8[1024]{0}', space=vmem, size = 0x400, scoped, tag = 'output window, operand 0, single buffered']
    #allocation3 [shape = 's32[1]{0}', space=sflag, size = 0x4, scoped, tag = 'scoped memory for tpu_custom_call.1']
    %13 = vsyncpa [#allocation3], 0
    // Predicated region
    $region2: #{tpu_custom_call.1} parent=1 // pred_check
      _
    $region3: #{tpu_custom_call.1} parent=1 // pred_check_branch
      %15 = sbr.rel (0) target = $region5
    $region4: #{tpu_custom_call.1} parent=1 // pred_region
      _
    $region5: #{tpu_custom_call.1} parent=1 // pred_fallthru
      _
    // Predicated region
    $region6: #{tpu_custom_call.1} parent=1 // pred_check
      _
    $region7: #{tpu_custom_call.1} parent=1 // pred_check_branch
      %17 = sbr.rel (0) target = $region9
    $region8: #{tpu_custom_call.1} parent=1 // pred_region
      _
    $region9: #{tpu_custom_call.1} parent=1 // pred_fallthru
      _
    // Predicated region
    $region10: #{tpu_custom_call.1} parent=1 // pred_check
      _
    $region11: #{tpu_custom_call.1} parent=1 // pred_check_branch
      %19 = sbr.rel (0) target = $region13
    $region12: #{tpu_custom_call.1} parent=1 // pred_region
      _
    $region13: #{tpu_custom_call.1} parent=1 // pred_fallthru
      _
    // Predicated region
    $region14: #{tpu_custom_call.1} parent=1 // pred_check
      _
    $region15: #{tpu_custom_call.1} parent=1 // pred_check_branch
      %21 = sbr.rel (0) target = $region17
    $region16: #{tpu_custom_call.1} parent=1 // pred_region
      _
    $region17: #{tpu_custom_call.1} parent=1 // pred_fallthru
      _
    // Predicated region
    $region18: #{tpu_custom_call.1} parent=1 // pred_check
      _
    $region19: #{tpu_custom_call.1} parent=1 // pred_check_branch
      %23 = sbr.rel (0) target = $region21
    $region20: #{tpu_custom_call.1} parent=1 // pred_region
      _
    $region21: #{tpu_custom_call.1} parent=1 // pred_fallthru
      _
    // Predicated region
    $region22: #{tpu_custom_call.1} parent=1 // pred_check
      _
    $region23: #{tpu_custom_call.1} parent=1 // pred_check_branch
      %25 = sbr.rel (0) target = $region25
    $region24: #{tpu_custom_call.1} parent=1 // pred_region
      _
    $region25: #{tpu_custom_call.1} parent=1 // pred_fallthru
      _
    // Predicated region
    $region26: #{tpu_custom_call.1} parent=1 // pred_check
      _
    $region27: #{tpu_custom_call.1} parent=1 // pred_check_branch
      %27 = sbr.rel (0) target = $region29
    $region28: #{tpu_custom_call.1} parent=1 // pred_region
      _
    $region29: #{tpu_custom_call.1} parent=1 // pred_fallthru
      _
    // Predicated region
    $region30: #{tpu_custom_call.1} parent=1 // pred_check
      _
    $region31: #{tpu_custom_call.1} parent=1 // pred_check_branch
      %29 = sbr.rel (0) target = $region33
    $region32: #{tpu_custom_call.1} parent=1 // pred_region
      _
    $region33: #{tpu_custom_call.1} parent=1 // pred_fallthru
      _
    %v30 = vld [vmem:[%s0] sm:$0xf]
    %v31 = vld [vmem:[%s1] sm:$0x3]
    %v32 = vsub.s32 %v31, 1
    %v33 = vlaneseq
    %v34 = vand.u32 %v33, 127
    %35 = vset.pattern.permute.xlu0 0
    %36 = vperm.xlu0 %35, %v32
    %v37 = vpop.permute.xlu0 %36
    %vm38 = vcmp.eq.s32.totalorder %v34, %v37
    %v39 = vsel %vm38, 1, 0
    %v40 = vcvt.s32.f32 %v39
    %v41 = vld [vmem:[%s2] sm:$0xff]
    %v42 = vld [vmem:[%s2 + $0x8] sm:$0xff]
    %v43 = vld [vmem:[%s2 + $0x10] sm:$0xff]
    %v44 = vld [vmem:[%s2 + $0x18] sm:$0xff]
    %v45 = vld [vmem:[%s2 + $0x20] sm:$0xff]
    %v46 = vld [vmem:[%s2 + $0x28] sm:$0xff]
    %v47 = vld [vmem:[%s2 + $0x30] sm:$0xff]
    %v48 = vld [vmem:[%s2 + $0x38] sm:$0xff]
    %v49 = vld [vmem:[%s2 + $0x40] sm:$0xff]
    %v50 = vld [vmem:[%s2 + $0x48] sm:$0xff]
    %v51 = vld [vmem:[%s2 + $0x50] sm:$0xff]
    %v52 = vld [vmem:[%s2 + $0x58] sm:$0xff]
    %v53 = vld [vmem:[%s2 + $0x60] sm:$0xff]
    %v54 = vld [vmem:[%s2 + $0x68] sm:$0xff]
    %v55 = vld [vmem:[%s2 + $0x70] sm:$0xff]
    %v56 = vld [vmem:[%s2 + $0x78] sm:$0xff]
    %v57 = vld [vmem:[%s2 + $0x80] sm:$0xff]
    %v58 = vld [vmem:[%s2 + $0x88] sm:$0xff]
    %v59 = vld [vmem:[%s2 + $0x90] sm:$0xff]
    %v60 = vld [vmem:[%s2 + $0x98] sm:$0xff]
    %v61 = vld [vmem:[%s2 + $0xa0] sm:$0xff]
    %v62 = vld [vmem:[%s2 + $0xa8] sm:$0xff]
    %v63 = vld [vmem:[%s2 + $0xb0] sm:$0xff]
    %v64 = vld [vmem:[%s2 + $0xb8] sm:$0xff]
    %v65 = vld [vmem:[%s2 + $0xc0] sm:$0xff]
    %v66 = vld [vmem:[%s2 + $0xc8] sm:$0xff]
    %v67 = vld [vmem:[%s2 + $0xd0] sm:$0xff]
    %v68 = vld [vmem:[%s2 + $0xd8] sm:$0xff]
    %v69 = vld [vmem:[%s2 + $0xe0] sm:$0xff]
    %v70 = vld [vmem:[%s2 + $0xe8] sm:$0xff]
    %v71 = vld [vmem:[%s2 + $0xf0] sm:$0xff]
    %v72 = vld [vmem:[%s2 + $0xf8] sm:$0xff]
    %v73 = vld [vmem:[%s2 + $0x100] sm:$0xff]
    %v74 = vld [vmem:[%s2 + $0x108] sm:$0xff]
    %v75 = vld [vmem:[%s2 + $0x110] sm:$0xff]
    %v76 = vld [vmem:[%s2 + $0x118] sm:$0xff]
    %v77 = vld [vmem:[%s2 + $0x120] sm:$0xff]
    %v78 = vld [vmem:[%s2 + $0x128] sm:$0xff]
    %v79 = vld [vmem:[%s2 + $0x130] sm:$0xff]
    %v80 = vld [vmem:[%s2 + $0x138] sm:$0xff]
    %v81 = vld [vmem:[%s2 + $0x140] sm:$0xff]
    %v82 = vld [vmem:[%s2 + $0x148] sm:$0xff]
    %v83 = vld [vmem:[%s2 + $0x150] sm:$0xff]
    %v84 = vld [vmem:[%s2 + $0x158] sm:$0xff]
    %v85 = vld [vmem:[%s2 + $0x160] sm:$0xff]
    %v86 = vld [vmem:[%s2 + $0x168] sm:$0xff]
    %v87 = vld [vmem:[%s2 + $0x170] sm:$0xff]
    %v88 = vld [vmem:[%s2 + $0x178] sm:$0xff]
    %v89 = vld [vmem:[%s2 + $0x180] sm:$0xff]
    %v90 = vld [vmem:[%s2 + $0x188] sm:$0xff]
    %v91 = vld [vmem:[%s2 + $0x190] sm:$0xff]
    %v92 = vld [vmem:[%s2 + $0x198] sm:$0xff]
    %v93 = vld [vmem:[%s2 + $0x1a0] sm:$0xff]
    %v94 = vld [vmem:[%s2 + $0x1a8] sm:$0xff]
    %v95 = vld [vmem:[%s2 + $0x1b0] sm:$0xf]
    %v96 = vld [vmem:[%s2 + $0x1b8] sm:$0xf]
    %v97 = vld [vmem:[%s3] sm:$0x7f]
    %v98 = vld [vmem:[%s3 + $0x8] sm:$0x7f]
    %vm99 = vcmask 56320
    %v101 = vsel %vm99, %v40, 0
    %vm103 = vcmask 1046528
    %v105 = vsel %vm103, %v97, 0
    %v108 = vsel %vm103, %v98, 0
    %110 = vmatprep.subr.mxu0 %v108
    %111 = vmatpush1.msra.mxu0 %v105
    %112 = vmatprep.subr.mxu0 0.0
    %113 = vmatpush1.msra.mxu0 0.0
    %114 = vmatprep.subr.mxu0 0.0
    %115 = vmatpush1.msra.mxu0 0.0
    %116 = vmatprep.subr.mxu0 0.0
    %117 = vmatpush1.msra.mxu0 0.0
    %118 = vmatprep.subr.mxu0 0.0
    %119 = vmatpush1.msra.mxu0 0.0
    %120 = vmatprep.subr.mxu0 0.0
    %121 = vmatpush1.msra.mxu0 0.0
    %122 = vmatprep.subr.mxu0 0.0
    %123 = vmatpush1.msra.mxu0 0.0
    %124 = vmatprep.subr.mxu0 0.0
    %125 = vmatpush1.msra.mxu0 0.0
    %126 = vmatprep.subr.mxu0 0.0
    %127 = vmatpush1.msra.mxu0 0.0
    %128 = vmatprep.subr.mxu0 0.0
    %129 = vmatpush1.msra.mxu0 0.0
    %130 = vmatprep.subr.mxu0 0.0
    %131 = vmatpush1.msra.mxu0 0.0
    %132 = vmatprep.subr.mxu0 0.0
    %133 = vmatpush1.msra.mxu0 0.0
    %134 = vmatprep.subr.mxu0 0.0
    %135 = vmatpush1.msra.mxu0 0.0
    %136 = vmatprep.subr.mxu0 0.0
    %137 = vmatpush1.msra.mxu0 0.0
    %138 = vmatprep.subr.mxu0 0.0
    %139 = vmatpush1.msra.mxu0 0.0
    %140 = vmatprep.subr.mxu0 0.0
    %141 = vmatpush1.msra.mxu0 0.0
    %142 = vmatprep.subr.mxu0 0.0
    %143 = vmatpush1.msra.mxu0 0.0
    %144 = vmatprep.subr.mxu0 0.0
    %145 = vmatpush1.msra.mxu0 0.0
    %146 = vmatprep.subr.mxu0 0.0
    %147 = vmatpush1.msra.mxu0 0.0
    %148 = vmatprep.subr.mxu0 0.0
    %149 = vmatpush1.msra.mxu0 0.0
    %150 = vmatprep.subr.mxu0 0.0
    %151 = vmatpush1.msra.mxu0 0.0
    %152 = vmatprep.subr.mxu0 0.0
    %153 = vmatpush1.msra.mxu0 0.0
    %154 = vmatprep.subr.mxu0 0.0
    %155 = vmatpush1.msra.mxu0 0.0
    %156 = vmatprep.subr.mxu0 0.0
    %157 = vmatpush1.msra.mxu0 0.0
    %158 = vmatprep.subr.mxu0 0.0
    %159 = vmatpush1.msra.mxu0 0.0
    %160 = vmatprep.subr.mxu0 0.0
    %161 = vmatpush1.msra.mxu0 0.0
    %162 = vmatprep.subr.mxu0 0.0
    %163 = vmatpush1.msra.mxu0 0.0
    %164 = vmatprep.subr.mxu0 0.0
    %165 = vmatpush1.msra.mxu0 0.0
    %166 = vmatprep.subr.mxu0 0.0
    %167 = vmatpush1.msra.mxu0 0.0
    %168 = vmatprep.subr.mxu0 0.0
    %169 = vmatpush1.msra.mxu0 0.0
    %170 = vmatprep.subr.mxu0 0.0
    %171 = vmatpush1.msra.mxu0 0.0
    %172 = vmatprep.subr.mxu0 0.0
    %173 = vmatpush1.msra.mxu0 0.0
    %174 = vmatprep.mubr.f32.mxu0 0.0
    %175 = vmatmul.mubr.f32.gmra.mrb[0].mxu0 %v101
    %v176 = vpop.f32.mrb[0].mxu0
    %v177 = vadd.f32 0.0, %v176
    %v178 = vpop.f32.mrb[0].mxu0
    %v179 = vadd.f32 0.0, %v178
    %180 = vdwg.mxu0
    %v183 = vunpack.c.l.s4 1983009808
    %v184 = vunpack.c.0.s8 %v183
    %v185 = vlaneseq
    %v186 = vshrl.u32 %v185, 7
    %v187 = vsub.s32 %v184, %v186
    %v188 = vrot.slane %v30, %v187
    %v189 = vcombine.high %v188, %v188
    %vm191 = vcmask 752640
    %v192 = vsel %vm191, %v189, 0
    %vm194 = vcmask 1043456
    %v196 = vsel %vm194, %v95, 0
    %v199 = vsel %vm194, %v96, 0
    %201 = vmatprep.subr.mxu0 %v42
    %202 = vmatpush1.msra.mxu0 %v41
    %203 = vmatprep.subr.mxu0 %v44
    %204 = vmatpush1.msra.mxu0 %v43
    %205 = vmatprep.subr.mxu0 %v46
    %206 = vmatpush1.msra.mxu0 %v45
    %207 = vmatprep.subr.mxu0 %v48
    %208 = vmatpush1.msra.mxu0 %v47
    %209 = vmatprep.subr.mxu0 %v50
    %210 = vmatpush1.msra.mxu0 %v49
    %211 = vmatprep.subr.mxu0 %v52
    %212 = vmatpush1.msra.mxu0 %v51
    %213 = vmatprep.subr.mxu0 %v54
    %214 = vmatpush1.msra.mxu0 %v53
    %215 = vmatprep.subr.mxu0 %v56
    %216 = vmatpush1.msra.mxu0 %v55
    %217 = vmatprep.subr.mxu0 %v58
    %218 = vmatpush1.msra.mxu0 %v57
    %219 = vmatprep.subr.mxu0 %v60
    %220 = vmatpush1.msra.mxu0 %v59
    %221 = vmatprep.subr.mxu0 %v62
    %222 = vmatpush1.msra.mxu0 %v61
    %223 = vmatprep.subr.mxu0 %v64
    %224 = vmatpush1.msra.mxu0 %v63
    %225 = vmatprep.subr.mxu0 %v66
    %226 = vmatpush1.msra.mxu0 %v65
    %227 = vmatprep.subr.mxu0 %v68
    %228 = vmatpush1.msra.mxu0 %v67
    %229 = vmatprep.subr.mxu0 %v70
    %230 = vmatpush1.msra.mxu0 %v69
    %231 = vmatprep.subr.mxu0 %v72
    %232 = vmatpush1.msra.mxu0 %v71
    %233 = vmatprep.subr.mxu0 %v74
    %234 = vmatpush1.msra.mxu0 %v73
    %235 = vmatprep.subr.mxu0 %v76
    %236 = vmatpush1.msra.mxu0 %v75
    %237 = vmatprep.subr.mxu0 %v78
    %238 = vmatpush1.msra.mxu0 %v77
    %239 = vmatprep.subr.mxu0 %v80
    %240 = vmatpush1.msra.mxu0 %v79
    %241 = vmatprep.subr.mxu0 %v82
    %242 = vmatpush1.msra.mxu0 %v81
    %243 = vmatprep.subr.mxu0 %v84
    %244 = vmatpush1.msra.mxu0 %v83
    %245 = vmatprep.subr.mxu0 %v86
    %246 = vmatpush1.msra.mxu0 %v85
    %247 = vmatprep.subr.mxu0 %v88
    %248 = vmatpush1.msra.mxu0 %v87
    %249 = vmatprep.subr.mxu0 %v90
    %250 = vmatpush1.msra.mxu0 %v89
    %251 = vmatprep.subr.mxu0 %v92
    %252 = vmatpush1.msra.mxu0 %v91
    %253 = vmatprep.subr.mxu0 %v94
    %254 = vmatpush1.msra.mxu0 %v93
    %255 = vmatprep.subr.mxu0 %v199
    %256 = vmatpush1.msra.mxu0 %v196
    %257 = vmatprep.subr.mxu0 0.0
    %258 = vmatpush1.msra.mxu0 0.0
    %259 = vmatprep.subr.mxu0 0.0
    %260 = vmatpush1.msra.mxu0 0.0
    %261 = vmatprep.subr.mxu0 0.0
    %262 = vmatpush1.msra.mxu0 0.0
    %263 = vmatprep.subr.mxu0 0.0
    %264 = vmatpush1.msra.mxu0 0.0
    %265 = vmatprep.mubr.f32.mxu0 %v192
    %266 = vmatmul.mubr.f32.gmra.mrb[0].mxu0 %v188
    %v267 = vpop.f32.mrb[0].mxu0
    %v268 = vadd.f32 %v177, %v267
    %v269 = vpop.f32.mrb[0].mxu0
    %v270 = vadd.f32 %v179, %v269
    %271 = vdwg.mxu0
    %v272 = vmax.f32 %v268, 0.0
    %v273 = vmax.f32 %v270, 0.0
    %v274 = vld [vmem:[%s4] sm:$0xff]
    %v275 = vld [vmem:[%s4 + $0x8] sm:$0xff]
    %v276 = vld [vmem:[%s4 + $0x10] sm:$0xff]
    %v277 = vld [vmem:[%s4 + $0x18] sm:$0xff]
    %v278 = vld [vmem:[%s4 + $0x20] sm:$0xff]
    %v279 = vld [vmem:[%s4 + $0x28] sm:$0xff]
    %v280 = vld [vmem:[%s4 + $0x30] sm:$0xff]
    %v281 = vld [vmem:[%s4 + $0x38] sm:$0xff]
    %v282 = vld [vmem:[%s4 + $0x40] sm:$0xff]
    %v283 = vld [vmem:[%s4 + $0x48] sm:$0xff]
    %v284 = vld [vmem:[%s4 + $0x50] sm:$0xff]
    %v285 = vld [vmem:[%s4 + $0x58] sm:$0xff]
    %v286 = vld [vmem:[%s4 + $0x60] sm:$0xff]
    %v287 = vld [vmem:[%s4 + $0x68] sm:$0xff]
    %v288 = vld [vmem:[%s4 + $0x70] sm:$0xff]
    %v289 = vld [vmem:[%s4 + $0x78] sm:$0xff]
    %v290 = vld [vmem:[%s4 + $0x80] sm:$0x3]
    %v291 = vld [vmem:[%s5] sm:$0x1]
    %v293 = vlaneseq
    %v294 = vshrl.u32 %v293, 7
    %v295 = vsub.s32 0, %v294
    %v296 = vrot.slane %v291, %v295
    %vm298 = vcmask 15360
    %v300 = vsel %vm298, %v273, 0
    %vm302 = vcmask 1041408
    %v304 = vsel %vm302, %v290, 0
    %306 = vmatprep.subr.mxu0 0.0
    %307 = vmatpush1.msra.mxu0 %v274
    %308 = vmatprep.subr.mxu0 0.0
    %309 = vmatpush1.msra.mxu0 %v275
    %310 = vmatprep.subr.mxu0 0.0
    %311 = vmatpush1.msra.mxu0 %v276
    %312 = vmatprep.subr.mxu0 0.0
    %313 = vmatpush1.msra.mxu0 %v277
    %314 = vmatprep.subr.mxu0 0.0
    %315 = vmatpush1.msra.mxu0 %v278
    %316 = vmatprep.subr.mxu0 0.0
    %317 = vmatpush1.msra.mxu0 %v279
    %318 = vmatprep.subr.mxu0 0.0
    %319 = vmatpush1.msra.mxu0 %v280
    %320 = vmatprep.subr.mxu0 0.0
    %321 = vmatpush1.msra.mxu0 %v281
    %322 = vmatprep.subr.mxu0 0.0
    %323 = vmatpush1.msra.mxu0 %v282
    %324 = vmatprep.subr.mxu0 0.0
    %325 = vmatpush1.msra.mxu0 %v283
    %326 = vmatprep.subr.mxu0 0.0
    %327 = vmatpush1.msra.mxu0 %v284
    %328 = vmatprep.subr.mxu0 0.0
    %329 = vmatpush1.msra.mxu0 %v285
    %330 = vmatprep.subr.mxu0 0.0
    %331 = vmatpush1.msra.mxu0 %v286
    %332 = vmatprep.subr.mxu0 0.0
    %333 = vmatpush1.msra.mxu0 %v287
    %334 = vmatprep.subr.mxu0 0.0
    %335 = vmatpush1.msra.mxu0 %v288
    %336 = vmatprep.subr.mxu0 0.0
    %337 = vmatpush1.msra.mxu0 %v289
    %338 = vmatprep.subr.mxu0 0.0
    %339 = vmatpush1.msra.mxu0 %v304
    %340 = vmatprep.subr.mxu0 0.0
    %341 = vmatpush1.msra.mxu0 0.0
    %342 = vmatprep.subr.mxu0 0.0
    %343 = vmatpush1.msra.mxu0 0.0
    %344 = vmatprep.subr.mxu0 0.0
    %345 = vmatpush1.msra.mxu0 0.0
    %346 = vmatprep.subr.mxu0 0.0
    %347 = vmatpush1.msra.mxu0 0.0
    %348 = vmatprep.subr.mxu0 0.0
    %349 = vmatpush1.msra.mxu0 0.0
    %350 = vmatprep.subr.mxu0 0.0
    %351 = vmatpush1.msra.mxu0 0.0
    %352 = vmatprep.subr.mxu0 0.0
    %353 = vmatpush1.msra.mxu0 0.0
    %354 = vmatprep.subr.mxu0 0.0
    %355 = vmatpush1.msra.mxu0 0.0
    %356 = vmatprep.subr.mxu0 0.0
    %357 = vmatpush1.msra.mxu0 0.0
    %358 = vmatprep.subr.mxu0 0.0
    %359 = vmatpush1.msra.mxu0 0.0
    %360 = vmatprep.subr.mxu0 0.0
    %361 = vmatpush1.msra.mxu0 0.0
    %362 = vmatprep.subr.mxu0 0.0
    %363 = vmatpush1.msra.mxu0 0.0
    %364 = vmatprep.subr.mxu0 0.0
    %365 = vmatpush1.msra.mxu0 0.0
    %366 = vmatprep.subr.mxu0 0.0
    %367 = vmatpush1.msra.mxu0 0.0
    %368 = vmatprep.subr.mxu0 0.0
    %369 = vmatpush1.msra.mxu0 0.0
    %370 = vmatprep.mubr.f32.mxu0 %v300
    %371 = vmatmul.mubr.f32.gmra.mrb[0].mxu0 %v272
    %v372 = vpop.f32.mrb[0].mxu0
    %v373 = vadd.f32 %v296, %v372
    %v374 = vpop.f32.mrb[0].mxu0
    %375 = vdwg.mxu0
    %v376 = vmax.f32 %v373, 0.0
    %v377 = vld [vmem:[%s6] sm:$0xff]
    %v378 = vld [vmem:[%s6 + $0x8] sm:$0xff]
    %v379 = vld [vmem:[%s6 + $0x10] sm:$0xff]
    %v380 = vld [vmem:[%s6 + $0x18] sm:$0xff]
    %v381 = vld [vmem:[%s6 + $0x20] sm:$0xff]
    %v382 = vld [vmem:[%s6 + $0x28] sm:$0xff]
    %v383 = vld [vmem:[%s6 + $0x30] sm:$0xff]
    %v384 = vld [vmem:[%s6 + $0x38] sm:$0xff]
    %v385 = vld [vmem:[%s6 + $0x40] sm:$0x1]
    %v386 = vld [vmem:[%s7] sm:$0x1]
    %v388 = vlaneseq
    %v389 = vshrl.u32 %v388, 7
    %v390 = vsub.s32 0, %v389
    %v391 = vrot.slane %v386, %v390
    %vm393 = vcmask 531456
    %v395 = vsel %vm393, %v376, 0
    %vm397 = vcmask 1040384
    %v399 = vsel %vm397, %v385, 0
    %401 = vmatprep.subr.mxu0 0.0
    %402 = vmatpush1.msra.mxu0 %v377
    %403 = vmatprep.subr.mxu0 0.0
    %404 = vmatpush1.msra.mxu0 %v378
    %405 = vmatprep.subr.mxu0 0.0
    %406 = vmatpush1.msra.mxu0 %v379
    %407 = vmatprep.subr.mxu0 0.0
    %408 = vmatpush1.msra.mxu0 %v380
    %409 = vmatprep.subr.mxu0 0.0
    %410 = vmatpush1.msra.mxu0 %v381
    %411 = vmatprep.subr.mxu0 0.0
    %412 = vmatpush1.msra.mxu0 %v382
    %413 = vmatprep.subr.mxu0 0.0
    %414 = vmatpush1.msra.mxu0 %v383
    %415 = vmatprep.subr.mxu0 0.0
    %416 = vmatpush1.msra.mxu0 %v384
    %417 = vmatprep.subr.mxu0 0.0
    %418 = vmatpush1.msra.mxu0 %v399
    %419 = vmatprep.subr.mxu0 0.0
    %420 = vmatpush1.msra.mxu0 0.0
    %421 = vmatprep.subr.mxu0 0.0
    %422 = vmatpush1.msra.mxu0 0.0
    %423 = vmatprep.subr.mxu0 0.0
    %424 = vmatpush1.msra.mxu0 0.0
    %425 = vmatprep.subr.mxu0 0.0
    %426 = vmatpush1.msra.mxu0 0.0
    %427 = vmatprep.subr.mxu0 0.0
    %428 = vmatpush1.msra.mxu0 0.0
    %429 = vmatprep.subr.mxu0 0.0
    %430 = vmatpush1.msra.mxu0 0.0
    %431 = vmatprep.subr.mxu0 0.0
    %432 = vmatpush1.msra.mxu0 0.0
    %433 = vmatprep.subr.mxu0 0.0
    %434 = vmatpush1.msra.mxu0 0.0
    %435 = vmatprep.subr.mxu0 0.0
    %436 = vmatpush1.msra.mxu0 0.0
    %437 = vmatprep.subr.mxu0 0.0
    %438 = vmatpush1.msra.mxu0 0.0
    %439 = vmatprep.subr.mxu0 0.0
    %440 = vmatpush1.msra.mxu0 0.0
    %441 = vmatprep.subr.mxu0 0.0
    %442 = vmatpush1.msra.mxu0 0.0
    %443 = vmatprep.subr.mxu0 0.0
    %444 = vmatpush1.msra.mxu0 0.0
    %445 = vmatprep.subr.mxu0 0.0
    %446 = vmatpush1.msra.mxu0 0.0
    %447 = vmatprep.subr.mxu0 0.0
    %448 = vmatpush1.msra.mxu0 0.0
    %449 = vmatprep.subr.mxu0 0.0
    %450 = vmatpush1.msra.mxu0 0.0
    %451 = vmatprep.subr.mxu0 0.0
    %452 = vmatpush1.msra.mxu0 0.0
    %453 = vmatprep.subr.mxu0 0.0
    %454 = vmatpush1.msra.mxu0 0.0
    %455 = vmatprep.subr.mxu0 0.0
    %456 = vmatpush1.msra.mxu0 0.0
    %457 = vmatprep.subr.mxu0 0.0
    %458 = vmatpush1.msra.mxu0 0.0
    %459 = vmatprep.subr.mxu0 0.0
    %460 = vmatpush1.msra.mxu0 0.0
    %461 = vmatprep.subr.mxu0 0.0
    %462 = vmatpush1.msra.mxu0 0.0
    %463 = vmatprep.subr.mxu0 0.0
    %464 = vmatpush1.msra.mxu0 0.0
    %465 = vmatprep.mubr.f32.mxu0 0.0
    %466 = vmatmul.mubr.f32.gmra.mrb[0].mxu0 %v395
    %v467 = vpop.f32.mrb[0].mxu0
    %v468 = vadd.f32 %v391, %v467
    %v469 = vpop.f32.mrb[0].mxu0
    %470 = vdwg.mxu0
    %vm471 = vcmask 386048
    %472 = vst.msk [vmem:[#allocation2] sm:$0x3] %vm471, %v468
    // Predicated region
    $region34: #{tpu_custom_call.1} parent=1 // pred_check
      _
    $region35: #{tpu_custom_call.1} parent=1 // pred_check_branch
      %474 = sbr.rel (0) target = $region37
    $region36: #{tpu_custom_call.1} parent=1 // pred_region
      %s476 = ssub.s32 32, 32
      %477 = vsyncadd [#allocation3], %s476
      %s479 = sshll.u32 [#allocation2], 4
      %s480 = int_to_ptr.vmem [resolvable:$true] %s479
      %482 = dma.vmem_to_hbm [thread:$0]  %s480, 32, %s8, [#allocation3]
    $region37: #{tpu_custom_call.1} parent=1 // pred_fallthru
      _
    // Predicated region
    $region38: #{tpu_custom_call.1} parent=1 // pred_check
      _
    $region39: #{tpu_custom_call.1} parent=1 // pred_check_branch
      %484 = sbr.rel (0) target = $region41
    $region40: #{tpu_custom_call.1} parent=1 // pred_region
      %485 = dma.done [#allocation3], 32
    $region41: #{tpu_custom_call.1} parent=1 // pred_fallthru
      _
    %486 = vsyncpa [#allocation3], 1

</llo_original>
